<compile_context>
chip_gen: v7x
topology: tpu7x:2x2x1
jax: 0.10.0
libtpu: 0.0.40
codegen_flags: <defaults>
</compile_context>

<pallas_src>
import jax
import jax.numpy as jnp
from jax.experimental import pallas as pl
from jax.experimental.pallas import tpu as pltpu


def flownmf3_wh_kernel(wt_ref, h_ref, out_ref):
    # wt_ref : (n_dim, K)       grid-invariant W^T = relu(decode(Z)).T
    # h_ref  : (K, tile_t)      current time tile of H (pre-activation)
    # out    : (n_dim, tile_t)  current time tile of the reconstruction W @ H
    h = jnp.maximum(h_ref[...], 0.0)                        # H_act = relu (VPU)
    out_ref[...] = jnp.dot(                                 # MXU, f32 accumulate
        wt_ref[...], h, preferred_element_type=jnp.float32
    ).astype(out_ref.dtype)


def _pick_tile_t(n_time, bytes_per_col, vmem_budget_bytes=24 << 20):
    """Largest lane-dense time tile whose pipeline footprint fits the budget.

    Prefers an even number of grid steps so both v7x TensorCores get work on
    the (only) parallel axis; on v5e/v6e the cost of 2 steps instead of 1 is a
    single ~0.35us step overhead, which is negligible.
    """
    if n_time % 128 != 0:
        return n_time                         # full-extent block (always legal)
    max_cols = max(128, vmem_budget_bytes // max(bytes_per_col, 1))
    candidates = [t for t in range(128, n_time + 1, 128)
                  if n_time % t == 0 and t <= max_cols]
    if not candidates:
        return 128
    even = [t for t in candidates if (n_time // t) % 2 == 0]
    return max(even) if even else max(candidates)


def flownmf3_forward(Z_s, Z_n, A, bias, H, *, tile_t=None, out_dtype=None):
    """FlowNMF3.forward():  relu(decode([Z_s | Z_n])).T @ relu(H).

    decode(Z) = Z @ A + bias is a frozen affine stand-in for the flow decoder.
    The decode + ReLU + transpose is grid-invariant w.r.t. the time axis, so it
    is hoisted here (tiny (K, n_dim) matmul, fused by XLA under jit); the
    Pallas kernel streams H and the output over a parallel time grid doing one
    MXU matmul per lane-dense tile.
    """
    K, n_src = Z_s.shape
    n_dim = A.shape[1]
    n_time = H.shape[1]
    assert Z_n.shape == (K, n_dim - n_src)
    assert H.shape[0] == K

    if out_dtype is None:
        out_dtype = H.dtype
    out_dtype = jnp.dtype(out_dtype)

    # ---- Hoisted, grid-invariant: W^T = relu(Z @ A + b).T  -> (n_dim, K) ----
    Z = jnp.concatenate([Z_s.astype(jnp.float32), Z_n.astype(jnp.float32)],
                        axis=1)
    Wt = jnp.maximum(
        jnp.dot(Z, A.astype(jnp.float32), preferred_element_type=jnp.float32)
        + bias.astype(jnp.float32),
        0.0,
    ).T
    # Match the streamed dtype so in-kernel MXU operands agree (no per-tile
    # cast/pack work); accumulation stays f32 inside the kernel.
    Wt = Wt.astype(H.dtype)

    # ---- Time tiling ---------------------------------------------------------
    if tile_t is None:
        # Double-buffered H tile + output tile per column of the time axis.
        bytes_per_col = 2 * (K * H.dtype.itemsize + n_dim * out_dtype.itemsize)
        tile_t = _pick_tile_t(n_time, bytes_per_col)
    assert n_time % tile_t == 0, "tile_t must divide n_time"
    grid = (n_time // tile_t,)

    cost = pl.CostEstimate(
        flops=2 * n_dim * K * n_time,
        transcendentals=0,
        bytes_accessed=(Wt.size * Wt.dtype.itemsize
                        + H.size * H.dtype.itemsize
                        + n_dim * n_time * out_dtype.itemsize),
    )

    return pl.pallas_call(
        flownmf3_wh_kernel,
        out_shape=jax.ShapeDtypeStruct((n_dim, n_time), out_dtype),
        grid=grid,
        in_specs=[
            # Grid-invariant W^T: same block every step; fetched once.
            pl.BlockSpec((n_dim, K), lambda j: (0, 0)),
            # Streamed H tile (lane-dense along time).
            pl.BlockSpec((K, tile_t), lambda j: (0, j)),
        ],
        out_specs=pl.BlockSpec((n_dim, tile_t), lambda j: (0, j)),
        compiler_params=pltpu.CompilerParams(
            dimension_semantics=("parallel",),
            vmem_limit_bytes=32 << 20,
        ),
        cost_estimate=cost,
    )(Wt, H)


if __name__ == "__main__":
    key = jax.random.PRNGKey(0)
    k_s, k_zn, k_h, k_a, k_b = jax.random.split(key, 5)

    # Small, deterministic model configuration (mirrors __init__ shapes).
    n_sources = 4
    n_cps = 2                       # n_comps_per_source
    K = n_sources * n_cps           # number of components
    prior_dim = 28                  # flow.prior.event_shape[0]
    n_dim = prior_dim + n_sources   # == S.shape[0]
    n_time = 512                    # == S.shape[1]  (lane-dense; even grid)

    # Buffer S (spectrogram to factorize) — only its mean feeds H init.
    S = jnp.abs(jax.random.normal(k_s, (n_dim, n_time), dtype=jnp.float32))

    # Z_s: eye(n_sources).repeat_interleave(n_cps, dim=0)  -> (K, n_sources)
    Z_s = jnp.repeat(jnp.eye(n_sources, dtype=jnp.float32), n_cps, axis=0)

    # Z_n: prior.sample -> standard normal  (K, n_dim - n_sources)
    Z_n = jax.random.normal(k_zn, (K, prior_dim), dtype=jnp.float32)

    # H init 'random': rand(K, n_time) * sqrt(S.mean() / K)
    H = jax.random.uniform(k_h, (K, n_time), dtype=jnp.float32) * jnp.sqrt(
        S.mean() / K
    )

    # Synthetic frozen affine flow decoder parameters: decode(Z) = Z @ A + b
    # TODO(synk): the real normalizing-flow decode() has no generic Pallas/XLA
    # closed form; this affine stand-in preserves forward()'s structure.
    A = jax.random.normal(k_a, (n_dim, n_dim), dtype=jnp.float32) * 0.2
    bias = jax.random.normal(k_b, (1, n_dim), dtype=jnp.float32) * 0.1

    fwd = jax.jit(flownmf3_forward)
    out = jax.block_until_ready(fwd(Z_s, Z_n, A, bias, H))

    # Pure-JAX reference for sanity.
    Z = jnp.concatenate([Z_s, Z_n], axis=1)
    ref = jnp.maximum(Z @ A + bias, 0.0).T @ jnp.maximum(H, 0.0)

    assert out.shape == (n_dim, n_time)
    assert jnp.allclose(out, ref, atol=1e-4, rtol=1e-4)
    print("KERNEL_OK")
</pallas_src>

<mosaic_0001>
module attributes {stable_mosaic.version = 11 : i64} {
  func.func @flownmf3_wh_kernel(%arg0: i32, %arg1: memref<32x8xf32, #tpu.memory_space<vmem>>, %arg2: memref<8x256xf32, #tpu.memory_space<vmem>>, %arg3: memref<32x256xf32, #tpu.memory_space<vmem>>) attributes {dimension_semantics = [#tpu.dimension_semantics<parallel>], iteration_bounds = array<i64: 2>, scalar_prefetch = 0 : i64, scratch_operands = 0 : i64, tpu.core_type = #tpu.core_type<tc>, window_params = [{pipeline_mode = #tpu.pipeline_mode<synchronous>, transform_indices = @transform_0, window_bounds = array<i64: 32, 8>}, {transform_indices = @transform_1, window_bounds = array<i64: 8, 256>}, {transform_indices = @transform_2, window_bounds = array<i64: 32, 256>}]} {
    %c0 = arith.constant 0 : index
    %c0_0 = arith.constant 0 : index
    %0 = vector.load %arg2[%c0, %c0_0] : memref<8x256xf32, #tpu.memory_space<vmem>>, vector<8x256xf32>
    %cst = arith.constant 0.000000e+00 : f32
    %1 = vector.broadcast %cst : f32 to vector<8x256xf32>
    %2 = arith.maximumf %0, %1 : vector<8x256xf32>
    %c0_1 = arith.constant 0 : index
    %c0_2 = arith.constant 0 : index
    %3 = vector.load %arg1[%c0_1, %c0_2] : memref<32x8xf32, #tpu.memory_space<vmem>>, vector<32x8xf32>
    %cst_3 = arith.constant dense<0.000000e+00> : vector<32x256xf32>
    %4 = tpu.matmul %3, %2, %cst_3 {dimension_numbers = #tpu.dot_dimension_numbers<[1], [0], [0], [1], [0, 0, 1, 1], [], []>} : vector<32x8xf32>, vector<8x256xf32>, vector<32x256xf32> -> vector<32x256xf32>
    %c0_4 = arith.constant 0 : index
    %c0_5 = arith.constant 0 : index
    %5 = vector.load %arg3[%c0_4, %c0_5] : memref<32x256xf32, #tpu.memory_space<vmem>>, vector<32x256xf32>
    tpu.vector_store %arg3[%c0_4, %c0_5], %4 {strides = array<i32>} : memref<32x256xf32, #tpu.memory_space<vmem>>, vector<32x256xf32>,
    return
  }
  func.func @transform_0(%arg0: i32) -> (i32, i32) {
    %c0_i32 = arith.constant 0 : i32
    %c0_i32_0 = arith.constant 0 : i32
    %c0_i32_1 = arith.constant 0 : i32
    return %c0_i32, %c0_i32_0 : i32, i32
  }
  func.func @transform_1(%arg0: i32) -> (i32, i32) {
    %c0_i32 = arith.constant 0 : i32
    %c0_i32_0 = arith.constant 0 : i32
    return %c0_i32, %arg0 : i32, i32
  }
  func.func @transform_2(%arg0: i32) -> (i32, i32) {
    %c0_i32 = arith.constant 0 : i32
    %c0_i32_0 = arith.constant 0 : i32
    return %c0_i32, %arg0 : i32, i32
  }
}

</mosaic_0001>

<llo_original>
// kernel: flownmf3_forward.1
$region0: #{flownmf3_forward.1}
  #allocation0 [shape = 'u32[]', space=smem, size = 0x4, offset = 0x4, fixed_abs, tag = 'smem constant byte address 0x4 - core index']
  #allocation1 [shape = 'u32[144,128]{1,0:T(1,128)}', space=vmem, size = 0x12000, scoped, tag = 'internal scratch']
  %s0 = inlined_call_operand.vmem [shape: f32[32,8], index: 0, kind: input, shape index: {}]
  %s1 = inlined_call_operand.vmem [shape: f32[8,512], index: 1, kind: input, shape index: {}]
  %s2 = inlined_call_operand.hbm [shape: f32[32,512], index: 2, kind: output, shape index: {}]
  %s3 = sld [smem:[#allocation0]]
  $region41: #{flownmf3_forward.1} parent=0
    _
  %s5 = ssub.s32 1, %s3
  %s6 = scalar_select 0, %s5, %s3
  $region1: #{flownmf3_forward.1} parent=0
    #allocation2 [shape = 'u8[65536]{0}', space=vmem, size = 0x10000, scoped, tag = 'output window, operand 0']
    #allocation3 [shape = 's32[2]{0}', space=sflag, size = 0x8, scoped, tag = 'scoped memory for flownmf3_forward.1']
    %7 = vsyncpa [#allocation3], 0
    %s8 = scalar_lea.sflag [#allocation3], 1
    %9 = vsyncpa %s8, 0
    loop: start=0, step=1, limit=4
    $region2: #{flownmf3_forward.1} parent=1 // loop_pre_header
      _
    $region3: #{flownmf3_forward.1} parent=1 // loop_header
      %s11 = sphi 0, %s15
      %p12 = scmp.ge.s32.totalorder %s11, 4
      %s19 = sphi 0, %s19
      %s21 = sphi 0, %s19
      %s22 = sphi 0, %s21
      %s36 = sphi 0, %s22
      %s42 = sphi 0, %s44
      %s45 = sphi 0, %s42
      %s46 = sphi 0, %s45
      %s62 = sphi 0, %s46
      %s68 = sphi 0, %s70
      %s71 = sphi 0, %s68
      %s72 = sphi 0, %s71
      %s88 = sphi 0, %s72
    $region4: #{flownmf3_forward.1} parent=1 // loop_header_branch
      %14 = sbr.rel (%p12) target = $region8
    $region5: #{flownmf3_forward.1} parent=1 // loop_body
      %s16 = ssub.s32 %s11, 1
      %s17 = ssub.s32 %s11, 2
      %s18 = sadd.s32 %s11, 1
      %s20 = sadd.s32 %s19, 1
      %p23 = scmp.eq.s32.totalorder %s11, 1
      %p24 = scmp.ne.s32.totalorder %s19, %s21
      %p25 = scmp.eq.s32.totalorder %s11, 0
      %p26 = por %p24, %p25
      %p27 = scmp.ne.s32.totalorder %s19, %s21
      %p28 = scmp.eq.s32.totalorder %s16, 1
      %p29 = por %p27, %p28
      %p30 = scmp.ne.s32.totalorder %s21, %s22
      %p31 = scmp.eq.s32.totalorder %s16, 0
      %p32 = por %p30, %p31
      %p33 = scmp.ne.s32.totalorder %s21, %s22
      %p34 = scmp.eq.s32.totalorder %s17, 1
      %p35 = por %p33, %p34
      %p37 = scmp.ne.s32.totalorder %s22, %s36
      %p38 = scmp.eq.s32.totalorder %s17, 0
      %p39 = por %p37, %p38
      %s40 = ssub.s32 %s11, %s18
      %p41 = scmp.eq.s32.totalorder %s40, 0
      %s43 = sadd.s32 %s42, 1
      %s44 = scalar_select %p41, %s42, %s43
      %p47 = pneg %p41
      %p48 = scmp.eq.s32.totalorder %s11, 1
      %p49 = por %p47, %p48
      %p50 = scmp.ne.s32.totalorder %s42, %s45
      %p51 = scmp.eq.s32.totalorder %s11, 0
      %p52 = por %p50, %p51
      %p53 = scmp.ne.s32.totalorder %s42, %s45
      %p54 = scmp.eq.s32.totalorder %s16, 1
      %p55 = por %p53, %p54
      %p56 = scmp.ne.s32.totalorder %s45, %s46
      %p57 = scmp.eq.s32.totalorder %s16, 0
      %p58 = por %p56, %p57
      %p59 = scmp.ne.s32.totalorder %s45, %s46
      %p60 = scmp.eq.s32.totalorder %s17, 1
      %p61 = por %p59, %p60
      %p63 = scmp.ne.s32.totalorder %s46, %s62
      %p64 = scmp.eq.s32.totalorder %s17, 0
      %p65 = por %p63, %p64
      %s66 = ssub.s32 %s11, %s18
      %p67 = scmp.eq.s32.totalorder %s66, 0
      %s69 = sadd.s32 %s68, 1
      %s70 = scalar_select %p67, %s68, %s69
      %p73 = pneg %p67
      %p74 = scmp.eq.s32.totalorder %s11, 1
      %p75 = por %p73, %p74
      %p76 = scmp.ne.s32.totalorder %s68, %s71
      %p77 = scmp.eq.s32.totalorder %s11, 0
      %p78 = por %p76, %p77
      %p79 = scmp.ne.s32.totalorder %s68, %s71
      %p80 = scmp.eq.s32.totalorder %s16, 1
      %p81 = por %p79, %p80
      %p82 = scmp.ne.s32.totalorder %s71, %s72
      %p83 = scmp.eq.s32.totalorder %s16, 0
      %p84 = por %p82, %p83
      %p85 = scmp.ne.s32.totalorder %s71, %s72
      %p86 = scmp.eq.s32.totalorder %s17, 1
      %p87 = por %p85, %p86
      %p89 = scmp.ne.s32.totalorder %s72, %s88
      %p90 = scmp.eq.s32.totalorder %s17, 0
      %p91 = por %p89, %p90
      %p92 = scmp.le.s32.totalorder 1, %s11
      %p93 = scmp.lt.s32.totalorder %s11, 3
      %p94 = pnand %p92, %p93
      %p95 = pneg %p94
      // Predicated region
      $region9: #{flownmf3_forward.1} parent=5 // pred_check
        _
      $region10: #{flownmf3_forward.1} parent=5 // pred_check_branch
        %97 = sbr.rel (%p94) target = $region12
      $region11: #{flownmf3_forward.1} parent=5 // pred_region
        %s98 = ssub.s32 %s11, 1
        // Predicated region
        $region13: #{flownmf3_forward.1} parent=11 // pred_check
          %p99 = pneg %p32
        $region14: #{flownmf3_forward.1} parent=11 // pred_check_branch
          %101 = sbr.rel (%p99) target = $region16
        $region15: #{flownmf3_forward.1} parent=11 // pred_region
          _
        $region16: #{flownmf3_forward.1} parent=11 // pred_fallthru
          _
      $region12: #{flownmf3_forward.1} parent=5 // pred_fallthru
        _
      %p102 = scmp.lt.s32.totalorder %s11, 2
      // Predicated region
      $region17: #{flownmf3_forward.1} parent=5 // pred_check
        %p103 = pneg %p102
      $region18: #{flownmf3_forward.1} parent=5 // pred_check_branch
        %105 = sbr.rel (%p103) target = $region20
      $region19: #{flownmf3_forward.1} parent=5 // pred_region
        // Predicated region
        $region21: #{flownmf3_forward.1} parent=19 // pred_check
          %p106 = pneg %p52
        $region22: #{flownmf3_forward.1} parent=19 // pred_check_branch
          %108 = sbr.rel (%p106) target = $region24
        $region23: #{flownmf3_forward.1} parent=19 // pred_region
          %s109 = smul.u32 2, %s11
          %p110 = scmp.lt.s32.totalorder %s109, 3
          %s111 = scalar_select %p110, %s109, 3
          %s112 = smul.addr %s111, 8
          %s113 = scalar_lea.vmem %s1, %s112
          %s114 = smul.u32 2, %s11
        $region24: #{flownmf3_forward.1} parent=19 // pred_fallthru
          _
      $region20: #{flownmf3_forward.1} parent=5 // pred_fallthru
        _
      %p115 = scmp.le.s32.totalorder 1, %s11
      %p116 = scmp.lt.s32.totalorder %s11, 3
      %p117 = pnand %p115, %p116
      %p118 = pneg %p117
      // Predicated region
      $region25: #{flownmf3_forward.1} parent=5 // pred_check
        _
      $region26: #{flownmf3_forward.1} parent=5 // pred_check_branch
        %120 = sbr.rel (%p117) target = $region28
      $region27: #{flownmf3_forward.1} parent=5 // pred_region
        %s121 = ssub.s32 %s11, 1
        %p122 = pneg %p32
        %p123 = pneg %p29
        %s124 = smul.u32 2, %s16
        %p125 = scmp.lt.s32.totalorder %s124, 3
        %s126 = scalar_select %p125, %s124, 3
        %s127 = smul.addr %s126, 8
        %s128 = scalar_lea.vmem %s1, %s127
        %p129 = pneg %p58
        %p130 = pneg %p55
        %p131 = pneg %p84
        %p132 = pneg %p81
        %s133 = sand.u32 %s71, 1
        %s134 = scalar_lea.sflag [#allocation3], %s133
        %s135 = sand.u32 %s71, 1
        %s136 = smul.addr %s135, 64
        %s137 = scalar_lea.vmem [#allocation2], %s136
        %s138 = smul.u32 2, %s16
        %p139 = scmp.lt.s32.totalorder %s138, 3
        %s140 = scalar_select %p139, %s138, 3
        %s141 = smul.addr %s140, 8
        %s142 = scalar_lea.vmem %s1, %s141
        %s143 = smul.u32 2, %s16
        %s144 = smul.u32 2, %s16
        %v145 = vld [vmem:[%s142] sm:$0xff]
        %v146 = vld [vmem:[%s142 + $0x8] sm:$0xff]
        %v147 = vmax.f32 %v145, 0.0
        %v148 = vmax.f32 %v146, 0.0
        %v149 = vld [vmem:[%s0] sm:$0xff]
        %v150 = vld [vmem:[%s0 + $0x8] sm:$0xff]
        %v151 = vld [vmem:[%s0 + $0x10] sm:$0xff]
        %v152 = vld [vmem:[%s0 + $0x18] sm:$0xff]
        %vm153 = vcmask 64512
        %v155 = vsel %vm153, %v149, 0
        %v158 = vsel %vm153, %v150, 0
        %v161 = vsel %vm153, %v151, 0
        %v164 = vsel %vm153, %v152, 0
        %166 = vmatprep.subr.mxu0 %v148
        %167 = vmatpush1.msra.mxu0 %v147
        %168 = vmatprep.subr.mxu0 0.0
        %169 = vmatpush1.msra.mxu0 0.0
        %170 = vmatprep.subr.mxu0 0.0
        %171 = vmatpush1.msra.mxu0 0.0
        %172 = vmatprep.subr.mxu0 0.0
        %173 = vmatpush1.msra.mxu0 0.0
        %174 = vmatprep.subr.mxu0 0.0
        %175 = vmatpush1.msra.mxu0 0.0
        %176 = vmatprep.subr.mxu0 0.0
        %177 = vmatpush1.msra.mxu0 0.0
        %178 = vmatprep.subr.mxu0 0.0
        %179 = vmatpush1.msra.mxu0 0.0
        %180 = vmatprep.subr.mxu0 0.0
        %181 = vmatpush1.msra.mxu0 0.0
        %182 = vmatprep.subr.mxu0 0.0
        %183 = vmatpush1.msra.mxu0 0.0
        %184 = vmatprep.subr.mxu0 0.0
        %185 = vmatpush1.msra.mxu0 0.0
        %186 = vmatprep.subr.mxu0 0.0
        %187 = vmatpush1.msra.mxu0 0.0
        %188 = vmatprep.subr.mxu0 0.0
        %189 = vmatpush1.msra.mxu0 0.0
        %190 = vmatprep.subr.mxu0 0.0
        %191 = vmatpush1.msra.mxu0 0.0
        %192 = vmatprep.subr.mxu0 0.0
        %193 = vmatpush1.msra.mxu0 0.0
        %194 = vmatprep.subr.mxu0 0.0
        %195 = vmatpush1.msra.mxu0 0.0
        %196 = vmatprep.subr.mxu0 0.0
        %197 = vmatpush1.msra.mxu0 0.0
        %198 = vmatprep.subr.mxu0 0.0
        %199 = vmatpush1.msra.mxu0 0.0
        %200 = vmatprep.subr.mxu0 0.0
        %201 = vmatpush1.msra.mxu0 0.0
        %202 = vmatprep.subr.mxu0 0.0
        %203 = vmatpush1.msra.mxu0 0.0
        %204 = vmatprep.subr.mxu0 0.0
        %205 = vmatpush1.msra.mxu0 0.0
        %206 = vmatprep.subr.mxu0 0.0
        %207 = vmatpush1.msra.mxu0 0.0
        %208 = vmatprep.subr.mxu0 0.0
        %209 = vmatpush1.msra.mxu0 0.0
        %210 = vmatprep.subr.mxu0 0.0
        %211 = vmatpush1.msra.mxu0 0.0
        %212 = vmatprep.subr.mxu0 0.0
        %213 = vmatpush1.msra.mxu0 0.0
        %214 = vmatprep.subr.mxu0 0.0
        %215 = vmatpush1.msra.mxu0 0.0
        %216 = vmatprep.subr.mxu0 0.0
        %217 = vmatpush1.msra.mxu0 0.0
        %218 = vmatprep.subr.mxu0 0.0
        %219 = vmatpush1.msra.mxu0 0.0
        %220 = vmatprep.subr.mxu0 0.0
        %221 = vmatpush1.msra.mxu0 0.0
        %222 = vmatprep.subr.mxu0 0.0
        %223 = vmatpush1.msra.mxu0 0.0
        %224 = vmatprep.subr.mxu0 0.0
        %225 = vmatpush1.msra.mxu0 0.0
        %226 = vmatprep.subr.mxu0 0.0
        %227 = vmatpush1.msra.mxu0 0.0
        %228 = vmatprep.subr.mxu0 0.0
        %229 = vmatpush1.msra.mxu0 0.0
        %230 = vmatprep.mubr.f32.mxu0 0.0
        %231 = vmatmul.mubr.f32.gmra.mrb[0].mxu0 %v155
        %v232 = vpop.f32.mrb[0].mxu0
        %v233 = vadd.f32 0.0, %v232
        %v234 = vpop.f32.mrb[0].mxu0
        %v235 = vadd.f32 0.0, %v234
        %236 = vmatprep.mubr.f32.mxu0 0.0
        %237 = vmatmul.mubr.f32.gmra.mrb[0].mxu0 %v158
        %v238 = vpop.f32.mrb[0].mxu0
        %v239 = vadd.f32 0.0, %v238
        %v240 = vpop.f32.mrb[0].mxu0
        %v241 = vadd.f32 0.0, %v240
        %242 = vmatprep.mubr.f32.mxu0 0.0
        %243 = vmatmul.mubr.f32.gmra.mrb[0].mxu0 %v161
        %v244 = vpop.f32.mrb[0].mxu0
        %v245 = vadd.f32 0.0, %v244
        %v246 = vpop.f32.mrb[0].mxu0
        %v247 = vadd.f32 0.0, %v246
        %248 = vmatprep.mubr.f32.mxu0 0.0
        %249 = vmatmul.mubr.f32.gmra.mrb[0].mxu0 %v164
        %v250 = vpop.f32.mrb[0].mxu0
        %v251 = vadd.f32 0.0, %v250
        %v252 = vpop.f32.mrb[0].mxu0
        %v253 = vadd.f32 0.0, %v252
        %254 = vdwg.mxu0
        %255 = vst [vmem:[%s137] sm:$0xff] %v233
        %256 = vst [vmem:[%s137 + $0x8] sm:$0xff] %v235
        %257 = vst [vmem:[%s137 + $0x10] sm:$0xff] %v239
        %258 = vst [vmem:[%s137 + $0x18] sm:$0xff] %v241
        %259 = vst [vmem:[%s137 + $0x20] sm:$0xff] %v245
        %260 = vst [vmem:[%s137 + $0x28] sm:$0xff] %v247
        %261 = vst [vmem:[%s137 + $0x30] sm:$0xff] %v251
        %262 = vst [vmem:[%s137 + $0x38] sm:$0xff] %v253
        %s263 = sand.u32 %s71, 1
        %s264 = scalar_lea.sflag [#allocation3], %s263
        %s265 = sand.u32 %s71, 1
        %s266 = smul.addr %s265, 64
        %s267 = scalar_lea.vmem [#allocation2], %s266
        // Predicated region
        $region29: #{flownmf3_forward.1} parent=27 // pred_check
          %p268 = pneg %p81
        $region30: #{flownmf3_forward.1} parent=27 // pred_check_branch
          %270 = sbr.rel (%p268) target = $region32
        $region31: #{flownmf3_forward.1} parent=27 // pred_region
          %s271 = smul.u32 2, %s16
          %s273 = ssub.s32 1024, 1024
          %274 = vsyncadd %s264, %s273
          %s275 = smul.addr %s271, 128
          %s276 = scalar_lea.hbm %s2, %s275
          %s277 = sshll.u32 %s267, 4
          %s278 = int_to_ptr.vmem [resolvable:$true] %s277
          %283 = dma.vmem_to_hbm [thread:$0]  %s278, 1024, %s276, %s264, 256, 512, 16
        $region32: #{flownmf3_forward.1} parent=27 // pred_fallthru
          _
      $region28: #{flownmf3_forward.1} parent=5 // pred_fallthru
        _
      %p284 = scmp.le.s32.totalorder 2, %s11
      // Predicated region
      $region33: #{flownmf3_forward.1} parent=5 // pred_check
        %p285 = pneg %p284
      $region34: #{flownmf3_forward.1} parent=5 // pred_check_branch
        %287 = sbr.rel (%p285) target = $region36
      $region35: #{flownmf3_forward.1} parent=5 // pred_region
        %s288 = ssub.s32 %s11, 2
        // Predicated region
        $region37: #{flownmf3_forward.1} parent=35 // pred_check
          %p289 = pneg %p87
        $region38: #{flownmf3_forward.1} parent=35 // pred_check_branch
          %291 = sbr.rel (%p289) target = $region40
        $region39: #{flownmf3_forward.1} parent=35 // pred_region
          %s292 = sand.u32 %s72, 1
          %s293 = scalar_lea.sflag [#allocation3], %s292
          %s294 = sand.u32 %s72, 1
          %s295 = smul.addr %s294, 64
          %s296 = scalar_lea.vmem [#allocation2], %s295
          %297 = dma.done %s293, 1024
        $region40: #{flownmf3_forward.1} parent=35 // pred_fallthru
          _
      $region36: #{flownmf3_forward.1} parent=5 // pred_fallthru
        _
    $region6: #{flownmf3_forward.1} parent=1 // loop_footer
      %s15 = sadd.s32 1, %s11
    $region7: #{flownmf3_forward.1} parent=1 // loop_footer_branch
      %10 = sbr.rel target = $region3
    $region8: #{flownmf3_forward.1} parent=1 // loop_exit
      _
    %298 = vsyncpa [#allocation3], 1
    %s299 = scalar_lea.sflag [#allocation3], 1
    %300 = vsyncpa %s299, 1

</llo_original>
